<compile_context>
chip_gen: v5e
topology: v5e:2x2
jax: 0.10.0
libtpu: 0.0.40
codegen_flags: <defaults>
</compile_context>

<pallas_src>
import math
import numpy as np
import jax
import jax.numpy as jnp
from jax import lax
from jax.experimental import pallas as pl
from jax.experimental.pallas import tpu as pltpu


# ----------------------------- sincos pos embed (numpy, same as reference) ---
def get_1d_sincos_pos_embed_from_grid(embed_dim, pos):
    assert embed_dim % 2 == 0
    omega = np.arange(embed_dim // 2, dtype=float)
    omega /= embed_dim / 2.0
    omega = 1.0 / 10000 ** omega
    pos = pos.reshape(-1)
    out = np.einsum('m,d->md', pos, omega)
    return np.concatenate([np.sin(out), np.cos(out)], axis=1)


def get_2d_sincos_pos_embed_from_grid(embed_dim, grid):
    assert embed_dim % 2 == 0
    emb_h = get_1d_sincos_pos_embed_from_grid(embed_dim // 2, grid[0])
    emb_w = get_1d_sincos_pos_embed_from_grid(embed_dim // 2, grid[1])
    return np.concatenate([emb_h, emb_w], axis=1)


def get_2d_sincos_pos_embed(embed_dim, grid_size, add_cls_token=False):
    grid_h = np.arange(grid_size, dtype=np.float32)
    grid_w = np.arange(grid_size, dtype=np.float32)
    grid = np.meshgrid(grid_w, grid_h)
    grid = np.stack(grid, axis=0).reshape([2, 1, grid_size, grid_size])
    pos_embed = get_2d_sincos_pos_embed_from_grid(embed_dim, grid)
    if add_cls_token:
        pos_embed = np.concatenate([np.zeros([1, embed_dim]), pos_embed], axis=0)
    return pos_embed


# ----------------------------------------------------------- Pallas kernel ---
def _embed_kernel(x_ref, w_ref, ids_ref, pos_ref, out_ref):
    """One batch block (rows = bt * (1 + len_keep); row 0 of every sample is a
    zero patch standing in for the CLS slot):

        out = x @ W  +  one_hot(ids) @ pos_table        (single aligned store)

    pos_table row 0     = cls_token + pos_embed[0]
    pos_table row 1 + p = pos_embed[1 + p] + proj_bias
    """
    emb = jnp.dot(x_ref[...], w_ref[...],
                  preferred_element_type=jnp.float32)              # (rows, Hp) f32
    rows = x_ref.shape[0]
    tp = pos_ref.shape[0]
    one_hot = (ids_ref[...] ==
               lax.broadcasted_iota(jnp.int32, (rows, tp), 1)
               ).astype(jnp.float32)                               # (rows, Tp)
    pos_rows = jnp.dot(one_hot, pos_ref[...],
                       preferred_element_type=jnp.float32)         # (rows, Hp)
    out_ref[...] = (emb + pos_rows).astype(out_ref.dtype)          # one full store


# ------------------------------------------------------------------ helpers --
def _round_up(x, m):
    return ((x + m - 1) // m) * m


def _vmem_capacity_bytes():
    try:
        return int(pltpu.get_tpu_info().vmem_capacity_bytes)
    except Exception:
        return 64 << 20        # conservative: v7x per-TensorCore VMEM


# ---------------------------------------------------------------- forward ----
def vit_mae_embeddings_forward(pixel_values, params, config, noise,
                               *, dot_dtype=jnp.bfloat16, out_dtype=jnp.float32):
    """pixel_values: (B, C, H, W) float32 (NCHW, like PyTorch)."""
    B, C, Himg, Wimg = pixel_values.shape
    ph = config["patch_size"]
    nH, nW = Himg // ph, Wimg // ph
    P = nH * nW
    K = C * ph * ph
    H = config["hidden_size"]
    len_keep = int(P * (1 - config["mask_ratio"]))
    R = 1 + len_keep                       # output rows per sample (cls + kept)

    # --- glue: random-masking bookkeeping ------------------------------------
    # TODO(synk): argsort-based per-sample shuffling has no Pallas TPU
    # equivalent; it stays in plain JAX (tiny, off the hot path).
    ids_shuffle = jnp.argsort(noise, axis=1).astype(jnp.int32)
    ids_restore = jnp.argsort(ids_shuffle, axis=1).astype(jnp.int32)
    ids_keep = ids_shuffle[:, :len_keep]                             # (B, L)
    mask = jnp.ones((B, P), dtype=jnp.float32).at[:, :len_keep].set(0.0)
    mask = jnp.take_along_axis(mask, ids_restore, axis=1)

    # --- lane-dense padding of contraction / hidden dims ---------------------
    Kp = _round_up(K, 128)
    Hp = _round_up(H, 128)
    Tp = _round_up(P + 1, 8)               # pos-table rows, sublane aligned

    # --- glue: patchify + keep-gather BEFORE the projection ------------------
    # (only kept rows are projected; whether XLA also avoids materializing the
    #  full (B, P, K) patch tensor is a perf — not correctness — concern.)
    patches = pixel_values.reshape(B, C, nH, ph, nW, ph)
    patches = patches.transpose(0, 2, 4, 1, 3, 5).reshape(B, P, K)
    kept = jnp.take_along_axis(patches, ids_keep[:, :, None], axis=1)  # (B,L,K)
    # one zero "CLS" row per sample + zero-pad K -> Kp: the kernel then writes
    # a single aligned (bt*R, Hp) slab per grid step (no interleave stores).
    x = jnp.pad(kept, ((0, 0), (1, 0), (0, Kp - K))).astype(dot_dtype)
    x = x.reshape(B * R, Kp)

    # --- projection weight, padded -------------------------------------------
    w = jnp.pad(params["w_proj"], ((0, Kp - K), (0, Hp - H))).astype(dot_dtype)

    # --- pos/bias/cls table (VMEM-resident, gathered in-kernel) --------------
    cls_row = params["cls_token"] + params["pos_embed"][0:1, :]       # (1, H)
    body = params["pos_embed"][1:, :] + params["b_proj"]              # (P, H)
    pos_table = jnp.concatenate([cls_row, body], axis=0)              # (P+1, H)
    pos_table = jnp.pad(pos_table,
                        ((0, Tp - (P + 1)), (0, Hp - H))).astype(jnp.float32)

    # per-output-row index into the table (0 == CLS slot)
    ids_full = jnp.concatenate(
        [jnp.zeros((B, 1), jnp.int32), ids_keep + 1], axis=1)         # (B, R)
    ids_flat = ids_full.reshape(B * R, 1)

    # --- batch-block sizing against the real per-core VMEM -------------------
    dot_bytes = jnp.dtype(dot_dtype).itemsize
    out_bytes = jnp.dtype(out_dtype).itemsize
    # bf16 packs 2 rows per sublane -> non-full blocks need 16-row alignment.
    row_align = 16 if min(dot_bytes, out_bytes) < 4 else 8

    def block_vmem_bytes(bt):
        rows = bt * R
        stream = rows * (Kp * dot_bytes + Hp * out_bytes + 4)    # x, out, ids blocks
        fixed = Kp * Hp * dot_bytes + Tp * Hp * 4                # weight, pos table
        interm = rows * (2 * Hp * 4 + Tp * 4)                    # emb, pos_rows, one_hot
        return 2 * (stream + fixed) + interm                     # double-buffered

    cap = _vmem_capacity_bytes()
    usable = int(cap * 0.9)
    block_budget = int(usable * 0.6)

    def rows_ok(bt):
        return bt == B or (bt * R) % row_align == 0

    divisors = [d for d in range(1, B + 1) if B % d == 0]
    valid = [d for d in divisors
             if rows_ok(d) and block_vmem_bytes(d) <= block_budget]
    multi = [d for d in valid if d <= B // 2]   # >=2 grid steps: pipelining + v7x 2 TCs
    if multi:
        bt = max(multi)
    elif valid:
        bt = max(valid)
    else:
        aligned = [d for d in divisors if rows_ok(d)]
        bt = min(aligned) if aligned else B

    grid = (B // bt,)
    est = block_vmem_bytes(bt)
    vmem_limit = int(min(usable, max(32 << 20, 2 * est)))

    rows_total = B * R
    cost = pl.CostEstimate(
        flops=2 * rows_total * Hp * (Kp + Tp),
        transcendentals=0,
        bytes_accessed=(rows_total * Kp * dot_bytes          # x
                        + Kp * Hp * dot_bytes                # weight
                        + rows_total * 4                     # ids
                        + Tp * Hp * 4                        # pos table
                        + rows_total * Hp * out_bytes))      # out

    out_flat = pl.pallas_call(
        _embed_kernel,
        out_shape=jax.ShapeDtypeStruct((rows_total, Hp), out_dtype),
        grid=grid,
        in_specs=[
            pl.BlockSpec((bt * R, Kp), lambda i: (i, 0)),     # x          (blocked)
            pl.BlockSpec((Kp, Hp), lambda i: (0, 0)),         # weight     (resident)
            pl.BlockSpec((bt * R, 1), lambda i: (i, 0)),      # row ids    (blocked)
            pl.BlockSpec((Tp, Hp), lambda i: (0, 0)),         # pos table  (resident)
        ],
        out_specs=pl.BlockSpec((bt * R, Hp), lambda i: (i, 0)),
        compiler_params=pltpu.CompilerParams(
            dimension_semantics=("parallel",),                # batch blocks independent
            vmem_limit_bytes=vmem_limit),
        cost_estimate=cost,
    )(x, w, ids_flat, pos_table)

    emb = out_flat.reshape(B, R, Hp)                          # free reshape
    if Hp != H:
        emb = emb[:, :, :H]                                   # strip lane padding
    return emb, mask, ids_restore


# ------------------------------------------------------------- param setup ---
def init_params(key, config):
    C = config["num_channels"]
    ph = config["patch_size"]
    hidden = config["hidden_size"]
    P = (config["image_size"] // ph) ** 2
    K = C * ph * ph

    k_w, k_b, k_cls = jax.random.split(key, 3)

    # xavier_uniform on W viewed as (hidden, K)  (as in initialize_weights)
    bound = math.sqrt(6.0 / (K + hidden))
    w_flat = jax.random.uniform(k_w, (hidden, K), jnp.float32, -bound, bound)
    w_proj = w_flat.T                                    # (K, hidden) for x @ W

    # Conv2d default bias init: U(-1/sqrt(fan_in), 1/sqrt(fan_in))
    bb = 1.0 / math.sqrt(K)
    b_proj = jax.random.uniform(k_b, (1, hidden), jnp.float32, -bb, bb)

    cls_token = (config["initializer_range"]
                 * jax.random.normal(k_cls, (1, hidden), jnp.float32))

    pos_embed = jnp.asarray(
        get_2d_sincos_pos_embed(hidden, int(P ** 0.5), add_cls_token=True),
        dtype=jnp.float32)                               # (P+1, hidden)

    return {"w_proj": w_proj, "b_proj": b_proj,
            "cls_token": cls_token, "pos_embed": pos_embed}


# ------------------------------------------------------ pure-JAX reference ---
def reference_forward(pixel_values, params, config, noise):
    B, C, H, W = pixel_values.shape
    ph = config["patch_size"]
    nH, nW = H // ph, W // ph
    P = nH * nW
    len_keep = int(P * (1 - config["mask_ratio"]))

    patches = pixel_values.reshape(B, C, nH, ph, nW, ph)
    patches = patches.transpose(0, 2, 4, 1, 3, 5).reshape(B, P, -1)
    emb = patches @ params["w_proj"] + params["b_proj"]          # (B,P,H)
    emb = emb + params["pos_embed"][None, 1:, :]

    ids_shuffle = jnp.argsort(noise, axis=1)
    ids_restore = jnp.argsort(ids_shuffle, axis=1)
    ids_keep = ids_shuffle[:, :len_keep]
    kept = jnp.take_along_axis(
        emb, ids_keep[:, :, None].repeat(emb.shape[-1], axis=-1), axis=1)
    mask = jnp.ones((B, P)).at[:, :len_keep].set(0.0)
    mask = jnp.take_along_axis(mask, ids_restore, axis=1)
    cls = (params["cls_token"] + params["pos_embed"][:1, :])[None].repeat(B, axis=0)
    return jnp.concatenate([cls, kept], axis=1), mask, ids_restore


# --------------------------------------------------------------------- main --
if __name__ == "__main__":
    config = dict(image_size=16, patch_size=4, num_channels=4,
                  hidden_size=32, mask_ratio=0.75, initializer_range=0.02)

    key = jax.random.PRNGKey(0)
    k_params, k_pix, k_noise = jax.random.split(key, 3)
    params = init_params(k_params, config)

    B = 2
    pixel_values = jax.random.normal(
        k_pix, (B, config["num_channels"], config["image_size"],
                config["image_size"]), jnp.float32)
    num_patches = (config["image_size"] // config["patch_size"]) ** 2
    noise = jax.random.uniform(k_noise, (B, num_patches), jnp.float32)

    # f32 MXU path: tight check against the pure-JAX reference.
    emb_f32, mask, ids_restore = vit_mae_embeddings_forward(
        pixel_values, params, config, noise, dot_dtype=jnp.float32)
    jax.block_until_ready(emb_f32)

    # bf16 MXU path (default; f32 accumulation): loose tolerance check.
    emb_bf16, _, _ = vit_mae_embeddings_forward(
        pixel_values, params, config, noise, dot_dtype=jnp.bfloat16)
    jax.block_until_ready(emb_bf16)

    ref_emb, ref_mask, ref_ids = reference_forward(
        pixel_values, params, config, noise)

    assert emb_f32.shape == ref_emb.shape
    assert jnp.allclose(emb_f32, ref_emb, atol=1e-4, rtol=1e-4)
    assert jnp.allclose(emb_bf16, ref_emb, atol=5e-2, rtol=5e-2)
    assert jnp.array_equal(mask, ref_mask)
    assert jnp.array_equal(ids_restore, ref_ids.astype(jnp.int32))

    print("KERNEL_OK")
</pallas_src>

<mosaic_0001>
module attributes {stable_mosaic.version = 11 : i64} {
  func.func @_embed_kernel(%arg0: i32, %arg1: memref<10x128xf32, #tpu.memory_space<vmem>>, %arg2: memref<128x128xf32, #tpu.memory_space<vmem>>, %arg3: memref<10x1xi32, #tpu.memory_space<vmem>>, %arg4: memref<24x128xf32, #tpu.memory_space<vmem>>, %arg5: memref<10x128xf32, #tpu.memory_space<vmem>>) attributes {dimension_semantics = [#tpu.dimension_semantics<parallel>], iteration_bounds = array<i64: 1>, scalar_prefetch = 0 : i64, scratch_operands = 0 : i64, tpu.core_type = #tpu.core_type<tc>, window_params = [{transform_indices = @transform_0, window_bounds = array<i64: 10, 128>}, {pipeline_mode = #tpu.pipeline_mode<synchronous>, transform_indices = @transform_1, window_bounds = array<i64: 128, 128>}, {transform_indices = @transform_2, window_bounds = array<i64: 10, 1>}, {pipeline_mode = #tpu.pipeline_mode<synchronous>, transform_indices = @transform_3, window_bounds = array<i64: 24, 128>}, {transform_indices = @transform_4, window_bounds = array<i64: 10, 128>}]} {
    %c0 = arith.constant 0 : index
    %c0_0 = arith.constant 0 : index
    %0 = vector.load %arg1[%c0, %c0_0] : memref<10x128xf32, #tpu.memory_space<vmem>>, vector<10x128xf32>
    %c0_1 = arith.constant 0 : index
    %c0_2 = arith.constant 0 : index
    %1 = vector.load %arg2[%c0_1, %c0_2] : memref<128x128xf32, #tpu.memory_space<vmem>>, vector<128x128xf32>
    %cst = arith.constant dense<0.000000e+00> : vector<10x128xf32>
    %2 = tpu.matmul %0, %1, %cst {dimension_numbers = #tpu.dot_dimension_numbers<[1], [0], [0], [1], [0, 0, 1, 1], [], []>} : vector<10x128xf32>, vector<128x128xf32>, vector<10x128xf32> -> vector<10x128xf32>
    %c0_3 = arith.constant 0 : index
    %c0_4 = arith.constant 0 : index
    %3 = vector.load %arg3[%c0_3, %c0_4] : memref<10x1xi32, #tpu.memory_space<vmem>>, vector<10x1xi32>
    %4 = tpu.iota {dimensions = array<i32: 1>} : vector<10x24xi32>
    %5 = vector.broadcast %3 : vector<10x1xi32> to vector<10x24xi32>
    %6 = arith.cmpi eq, %5, %4 : vector<10x24xi32>
    %7 = arith.extui %6 : vector<10x24xi1> to vector<10x24xi32>
    %8 = arith.sitofp %7 : vector<10x24xi32> to vector<10x24xf32>
    %c0_5 = arith.constant 0 : index
    %c0_6 = arith.constant 0 : index
    %9 = vector.load %arg4[%c0_5, %c0_6] : memref<24x128xf32, #tpu.memory_space<vmem>>, vector<24x128xf32>
    %cst_7 = arith.constant dense<0.000000e+00> : vector<10x128xf32>
    %10 = tpu.matmul %8, %9, %cst_7 {dimension_numbers = #tpu.dot_dimension_numbers<[1], [0], [0], [1], [0, 0, 1, 1], [], []>} : vector<10x24xf32>, vector<24x128xf32>, vector<10x128xf32> -> vector<10x128xf32>
    %11 = arith.addf %2, %10 : vector<10x128xf32>
    %c0_8 = arith.constant 0 : index
    %c0_9 = arith.constant 0 : index
    %12 = vector.load %arg5[%c0_8, %c0_9] : memref<10x128xf32, #tpu.memory_space<vmem>>, vector<10x128xf32>
    tpu.vector_store %arg5[%c0_8, %c0_9], %11 {strides = array<i32>} : memref<10x128xf32, #tpu.memory_space<vmem>>, vector<10x128xf32>,
    return
  }
  func.func @transform_0(%arg0: i32) -> (i32, i32) {
    %c0_i32 = arith.constant 0 : i32
    %c0_i32_0 = arith.constant 0 : i32
    return %arg0, %c0_i32 : i32, i32
  }
  func.func @transform_1(%arg0: i32) -> (i32, i32) {
    %c0_i32 = arith.constant 0 : i32
    %c0_i32_0 = arith.constant 0 : i32
    %c0_i32_1 = arith.constant 0 : i32
    return %c0_i32, %c0_i32_0 : i32, i32
  }
  func.func @transform_2(%arg0: i32) -> (i32, i32) {
    %c0_i32 = arith.constant 0 : i32
    %c0_i32_0 = arith.constant 0 : i32
    return %arg0, %c0_i32 : i32, i32
  }
  func.func @transform_3(%arg0: i32) -> (i32, i32) {
    %c0_i32 = arith.constant 0 : i32
    %c0_i32_0 = arith.constant 0 : i32
    %c0_i32_1 = arith.constant 0 : i32
    return %c0_i32, %c0_i32_0 : i32, i32
  }
  func.func @transform_4(%arg0: i32) -> (i32, i32) {
    %c0_i32 = arith.constant 0 : i32
    %c0_i32_0 = arith.constant 0 : i32
    return %arg0, %c0_i32 : i32, i32
  }
}

</mosaic_0001>

<llo_original>
// kernel: tpu_custom_call.1
$region0: #{tpu_custom_call.1}
  #allocation0 [shape = 'u32[]', space=smem, size = 0x4, offset = 0x4, fixed_abs, tag = 'smem constant byte address 0x4 - core index']
  #allocation1 [shape = 'u32[72,128]{1,0:T(1,128)}', space=vmem, size = 0x9000, scoped, tag = 'internal scratch']
  %s0 = inlined_call_operand.vmem [shape: f32[10,128], index: 0, kind: input, shape index: {}]
  %s1 = inlined_call_operand.hbm [shape: f32[128,128], index: 1, kind: input, shape index: {}]
  %s2 = inlined_call_operand.vmem [shape: s32[10,1], index: 2, kind: input, shape index: {}]
  %s3 = inlined_call_operand.hbm [shape: f32[24,128], index: 3, kind: input, shape index: {}]
  %s4 = inlined_call_operand.hbm [shape: f32[10,128], index: 4, kind: output, shape index: {}]
  %s5 = sld [smem:[#allocation0]]
  $region34: #{tpu_custom_call.1} parent=0
    _
  %s7 = ssub.s32 1, %s5
  %s8 = scalar_select 0, %s7, %s5
  $region1: #{tpu_custom_call.1} parent=0
    #allocation2 [shape = 'u8[65536]{0}', space=vmem, size = 0x10000, scoped, tag = 'input window, operand 1, single buffered']
    #allocation3 [shape = 's32[1]{0}', space=sflag, size = 0x4, scoped, tag = 'scoped memory for tpu_custom_call.1']
    #allocation4 [shape = 's32[1]{0}', space=sflag, size = 0x4, scoped, tag = 'scoped memory for tpu_custom_call.1']
    #allocation5 [shape = 'u8[12288]{0}', space=vmem, size = 0x3000, scoped, tag = 'input window, operand 3, single buffered']
    #allocation6 [shape = 's32[1]{0}', space=sflag, size = 0x4, scoped, tag = 'scoped memory for tpu_custom_call.1']
    #allocation7 [shape = 'u8[8192]{0}', space=vmem, size = 0x2000, scoped, tag = 'output window, operand 0, single buffered']
    %9 = vsyncpa [#allocation3], 0
    %10 = vsyncpa [#allocation6], 0
    %11 = vsyncpa [#allocation4], 0
    // Predicated region
    $region2: #{tpu_custom_call.1} parent=1 // pred_check
      _
    $region3: #{tpu_custom_call.1} parent=1 // pred_check_branch
      %13 = sbr.rel (0) target = $region5
    $region4: #{tpu_custom_call.1} parent=1 // pred_region
      _
    $region5: #{tpu_custom_call.1} parent=1 // pred_fallthru
      _
    // Predicated region
    $region6: #{tpu_custom_call.1} parent=1 // pred_check
      _
    $region7: #{tpu_custom_call.1} parent=1 // pred_check_branch
      %15 = sbr.rel (0) target = $region9
    $region8: #{tpu_custom_call.1} parent=1 // pred_region
      %17 = vsyncadd [#allocation3], 0
      %s18 = sshll.u32 %s1, 4
      %s19 = int_to_ptr.hbm [resolvable:$true] %s18
      %s20 = sshll.u32 [#allocation2], 4
      %s21 = int_to_ptr.vmem [resolvable:$true] %s20
      %26 = dma.hbm_to_vmem [thread:$0]  %s19, 2048, %s21, [#allocation3], 128, 128, 8
    $region9: #{tpu_custom_call.1} parent=1 // pred_fallthru
      _
    // Predicated region
    $region10: #{tpu_custom_call.1} parent=1 // pred_check
      _
    $region11: #{tpu_custom_call.1} parent=1 // pred_check_branch
      %28 = sbr.rel (0) target = $region13
    $region12: #{tpu_custom_call.1} parent=1 // pred_region
      _
    $region13: #{tpu_custom_call.1} parent=1 // pred_fallthru
      _
    // Predicated region
    $region14: #{tpu_custom_call.1} parent=1 // pred_check
      _
    $region15: #{tpu_custom_call.1} parent=1 // pred_check_branch
      %30 = sbr.rel (0) target = $region17
    $region16: #{tpu_custom_call.1} parent=1 // pred_region
      %32 = vsyncadd [#allocation6], 0
      %s33 = sshll.u32 %s3, 4
      %s34 = int_to_ptr.hbm [resolvable:$true] %s33
      %s35 = sshll.u32 [#allocation5], 4
      %s36 = int_to_ptr.vmem [resolvable:$true] %s35
      %41 = dma.hbm_to_vmem [thread:$0]  %s34, 384, %s36, [#allocation6], 128, 128, 8
    $region17: #{tpu_custom_call.1} parent=1 // pred_fallthru
      _
    // Predicated region
    $region18: #{tpu_custom_call.1} parent=1 // pred_check
      _
    $region19: #{tpu_custom_call.1} parent=1 // pred_check_branch
      %43 = sbr.rel (0) target = $region21
    $region20: #{tpu_custom_call.1} parent=1 // pred_region
      %45 = dma.done [#allocation3], 2048
    $region21: #{tpu_custom_call.1} parent=1 // pred_fallthru
      _
    // Predicated region
    $region22: #{tpu_custom_call.1} parent=1 // pred_check
      _
    $region23: #{tpu_custom_call.1} parent=1 // pred_check_branch
      %47 = sbr.rel (0) target = $region25
    $region24: #{tpu_custom_call.1} parent=1 // pred_region
      %49 = dma.done [#allocation6], 384
    $region25: #{tpu_custom_call.1} parent=1 // pred_fallthru
      _
    %v50 = vld [vmem:[%s0] sm:$0xff]
    %v51 = vld [vmem:[%s0 + $0x8] sm:$0x3]
    %v52 = vld [vmem:[#allocation2] sm:$0xff]
    %v53 = vld [vmem:[#allocation2 + $0x8] sm:$0xff]
    %v54 = vld [vmem:[#allocation2 + $0x10] sm:$0xff]
    %v55 = vld [vmem:[#allocation2 + $0x18] sm:$0xff]
    %v56 = vld [vmem:[#allocation2 + $0x20] sm:$0xff]
    %v57 = vld [vmem:[#allocation2 + $0x28] sm:$0xff]
    %v58 = vld [vmem:[#allocation2 + $0x30] sm:$0xff]
    %v59 = vld [vmem:[#allocation2 + $0x38] sm:$0xff]
    %v60 = vld [vmem:[#allocation2 + $0x40] sm:$0xff]
    %v61 = vld [vmem:[#allocation2 + $0x48] sm:$0xff]
    %v62 = vld [vmem:[#allocation2 + $0x50] sm:$0xff]
    %v63 = vld [vmem:[#allocation2 + $0x58] sm:$0xff]
    %v64 = vld [vmem:[#allocation2 + $0x60] sm:$0xff]
    %v65 = vld [vmem:[#allocation2 + $0x68] sm:$0xff]
    %v66 = vld [vmem:[#allocation2 + $0x70] sm:$0xff]
    %v67 = vld [vmem:[#allocation2 + $0x78] sm:$0xff]
    %v68 = vld [vmem:[%s2] sm:$0xff]
    %v69 = vld [vmem:[%s2 + $0x8] sm:$0x3]
    %v70 = vlaneseq
    %v71 = vand.u32 %v70, 127
    %72 = vset.pattern.permute.xlu0 0
    %73 = vperm.xlu0 %72, %v68
    %v74 = vpop.permute.xlu0 %73
    %75 = vset.pattern.permute.xlu0 0
    %76 = vperm.xlu0 %75, %v69
    %v77 = vpop.permute.xlu0 %76
    %vm78 = vcmp.eq.s32.totalorder %v74, %v71
    %vm79 = vcmp.eq.s32.totalorder %v77, %v71
    %v80 = vsel %vm78, 1, 0
    %v81 = vsel %vm79, 1, 0
    %v82 = vcvt.s32.f32 %v80
    %v83 = vcvt.s32.f32 %v81
    %v84 = vld [vmem:[#allocation5] sm:$0xff]
    %v85 = vld [vmem:[#allocation5 + $0x8] sm:$0xff]
    %v86 = vld [vmem:[#allocation5 + $0x10] sm:$0xff]
    %vm87 = vcmask 195584
    %v89 = vsel %vm87, %v82, 0
    %v92 = vsel %vm87, %v83, 0
    %94 = vmatpush.msra.mxu0 0.0
    %95 = vmatpush.msra.mxu0 0.0
    %96 = vmatpush.msra.mxu0 0.0
    %97 = vmatpush.msra.mxu0 0.0
    %98 = vmatpush.msra.mxu0 0.0
    %99 = vmatpush.msra.mxu0 0.0
    %100 = vmatpush.msra.mxu0 0.0
    %101 = vmatpush.msra.mxu0 0.0
    %102 = vmatpush.msra.mxu0 0.0
    %103 = vmatpush.msra.mxu0 0.0
    %104 = vmatpush.msra.mxu0 0.0
    %105 = vmatpush.msra.mxu0 0.0
    %106 = vmatpush.msra.mxu0 0.0
    %107 = vmatpush.msra.mxu0 %v86
    %108 = vmatpush.msra.mxu0 %v85
    %109 = vmatpush.msra.mxu0 %v84
    %110 = vmatmul.f32.gmra.mxu0 %v89
    %v111 = vpop.f32.mrf.mxu0
    %v112 = vadd.f32 0.0, %v111
    %113 = vmatmul.f32.gmra.mxu0 %v92
    %v114 = vpop.f32.mrf.mxu0
    %v115 = vadd.f32 0.0, %v114
    %116 = vdwg.mxu0
    %117 = vmatpush.msra.mxu0 %v67
    %118 = vmatpush.msra.mxu0 %v66
    %119 = vmatpush.msra.mxu0 %v65
    %120 = vmatpush.msra.mxu0 %v64
    %121 = vmatpush.msra.mxu0 %v63
    %122 = vmatpush.msra.mxu0 %v62
    %123 = vmatpush.msra.mxu0 %v61
    %124 = vmatpush.msra.mxu0 %v60
    %125 = vmatpush.msra.mxu0 %v59
    %126 = vmatpush.msra.mxu0 %v58
    %127 = vmatpush.msra.mxu0 %v57
    %128 = vmatpush.msra.mxu0 %v56
    %129 = vmatpush.msra.mxu0 %v55
    %130 = vmatpush.msra.mxu0 %v54
    %131 = vmatpush.msra.mxu0 %v53
    %132 = vmatpush.msra.mxu0 %v52
    %133 = vmatmul.f32.gmra.mxu0 %v50
    %v134 = vpop.f32.mrf.mxu0
    %v135 = vadd.f32 %v112, %v134
    %136 = vmatmul.f32.gmra.mxu0 %v51
    %v137 = vpop.f32.mrf.mxu0
    %v138 = vadd.f32 %v115, %v137
    %139 = vdwg.mxu0
    %140 = vst [vmem:[#allocation7] sm:$0xff] %v135
    %141 = vst [vmem:[#allocation7 + $0x8] sm:$0x3] %v138
    // Predicated region
    $region26: #{tpu_custom_call.1} parent=1 // pred_check
      _
    $region27: #{tpu_custom_call.1} parent=1 // pred_check_branch
      %143 = sbr.rel (0) target = $region29
    $region28: #{tpu_custom_call.1} parent=1 // pred_region
      %145 = vsyncadd [#allocation4], 0
      %s146 = sshll.u32 [#allocation7], 4
      %s147 = int_to_ptr.vmem [resolvable:$true] %s146
      %s148 = sshll.u32 %s4, 4
      %s149 = int_to_ptr.hbm [resolvable:$true] %s148
      %154 = dma.vmem_to_hbm [thread:$0]  %s147, 256, %s149, [#allocation4], 128, 128, 8
    $region29: #{tpu_custom_call.1} parent=1 // pred_fallthru
      _
    // Predicated region
    $region30: #{tpu_custom_call.1} parent=1 // pred_check
      _
    $region31: #{tpu_custom_call.1} parent=1 // pred_check_branch
      %156 = sbr.rel (0) target = $region33
    $region32: #{tpu_custom_call.1} parent=1 // pred_region
      %158 = dma.done [#allocation4], 256
    $region33: #{tpu_custom_call.1} parent=1 // pred_fallthru
      _
    %159 = vsyncpa [#allocation3], 1
    %160 = vsyncpa [#allocation6], 1
    %161 = vsyncpa [#allocation4], 1

</llo_original>
